<compile_context>
chip_gen: v6e
topology: v6e:2x2x1
jax: 0.10.0
libtpu: 0.0.40
codegen_flags: <defaults>
</compile_context>

<pallas_src>
import functools

import jax
import jax.numpy as jnp
from jax.experimental import pallas as pl
from jax.experimental.pallas import tpu as pltpu


def layernorm_kernel(x_ref, params_ref, o_ref, *, eps):
    # x_ref: (tile_rows, D) block of rows.
    # params_ref: (2, D) f32 (row 0 = scale, row 1 = shift), resident across
    # the whole grid (constant index_map).
    x = x_ref[...].astype(jnp.float32)                            # (tr, D)
    mean = jnp.mean(x, axis=-1, keepdims=True)                    # (tr, 1)
    centered = x - mean
    var = jnp.mean(centered * centered, axis=-1, keepdims=True)   # biased var
    norm = centered * jax.lax.rsqrt(var + eps)                    # EUP rsqrt
    scale = params_ref[0:1, :]                                    # (1, D) f32
    shift = params_ref[1:2, :]                                    # (1, D) f32
    o_ref[...] = (scale * norm + shift).astype(o_ref.dtype)


def _choose_tile_rows(R, D, itemsize, *, target_block_bytes=2 << 20, max_rows=1024):
    """Pick a row tile: big enough to approach the HBM roofline, small enough
    to double-buffer comfortably in VMEM, multiple of 8 (sublanes)."""
    rows = target_block_bytes // max(1, D * itemsize)
    rows = int(min(max_rows, max(8, rows)))
    rows -= rows % 8                                    # sublane multiple

    r_up = ((R + 7) // 8) * 8                           # problem rows, rounded up
    rows = min(rows, max(8, r_up))                      # never bigger than needed

    # Keep >= 4 grid steps when the problem allows, so the pipeline (and v7x
    # megacore sharding of the parallel axis) has work to overlap.
    min_steps = 4
    if r_up >= min_steps * 8:
        rows = min(rows, max(8, (r_up // min_steps) // 8 * 8))
    return rows


def layer_norm(x, scale, shift, *, eps=1e-5, tile_rows=None):
    orig_shape = x.shape
    D = orig_shape[-1]
    x2 = x.reshape(-1, D)
    R = x2.shape[0]
    itemsize = x2.dtype.itemsize

    if tile_rows is None:
        tile_rows = _choose_tile_rows(R, D, itemsize)

    # Hoist the f32 upcast of the params out of the kernel; fuse into 1 input.
    params = jnp.stack(
        [scale.reshape(D).astype(jnp.float32),
         shift.reshape(D).astype(jnp.float32)],
        axis=0)                                         # (2, D) f32

    grid = (pl.cdiv(R, tile_rows),)                     # partial last block OK
    kernel = functools.partial(layernorm_kernel, eps=eps)

    cost = pl.CostEstimate(
        flops=int(7 * R * D),
        transcendentals=int(R),
        bytes_accessed=int(2 * R * D * itemsize + 2 * D * 4),
    )

    out = pl.pallas_call(
        kernel,
        out_shape=jax.ShapeDtypeStruct((R, D), x.dtype),
        grid_spec=pltpu.PrefetchScalarGridSpec(
            num_scalar_prefetch=0,
            grid=grid,
            in_specs=[
                pl.BlockSpec((tile_rows, D), lambda i: (i, 0)),
                pl.BlockSpec((2, D), lambda i: (0, 0)),   # resident params
            ],
            out_specs=pl.BlockSpec((tile_rows, D), lambda i: (i, 0)),
        ),
        compiler_params=pltpu.CompilerParams(
            dimension_semantics=("parallel",),
            vmem_limit_bytes=48 * 1024 * 1024,           # safe on v5e/v6e/v7x
        ),
        cost_estimate=cost,
    )(x2, params)

    return out.reshape(orig_shape)


def _reference(x, scale, shift, eps=1e-5):
    x32 = x.astype(jnp.float32)
    mean = jnp.mean(x32, axis=-1, keepdims=True)
    var = jnp.mean((x32 - mean) ** 2, axis=-1, keepdims=True)
    out = scale * ((x32 - mean) / jnp.sqrt(var + eps)) + shift
    return out.astype(x.dtype)


if __name__ == "__main__":
    key = jax.random.PRNGKey(0)
    batch, seq, emb_dim = 2, 8, 32

    x = jax.random.normal(key, (batch, seq, emb_dim), dtype=jnp.float32)

    # Parameter init matching the PyTorch module (both nn.Parameter(torch.ones)).
    scale = jnp.ones((emb_dim,), dtype=jnp.float32)
    shift = jnp.ones((emb_dim,), dtype=jnp.float32)

    out = layer_norm(x, scale, shift, eps=1e-5)
    out = jax.block_until_ready(out)
    ref = _reference(x, scale, shift)
    assert out.shape == x.shape
    assert jnp.allclose(out, ref, atol=1e-5, rtol=1e-5)

    # Non-divisible row count with a small forced tile: exercises the partial
    # last-block path (padded loads / masked stores must not leak garbage).
    key2 = jax.random.PRNGKey(1)
    x_odd = jax.random.normal(key2, (3, 7, emb_dim), dtype=jnp.float32)  # R=21
    out_odd = layer_norm(x_odd, scale, shift, eps=1e-5, tile_rows=8)
    out_odd = jax.block_until_ready(out_odd)
    ref_odd = _reference(x_odd, scale, shift)
    assert out_odd.shape == x_odd.shape
    assert jnp.allclose(out_odd, ref_odd, atol=1e-5, rtol=1e-5)

    # bf16 input path: upcast to f32 in-kernel, cast back on store.
    x_bf16 = x.astype(jnp.bfloat16)
    out_bf16 = jax.block_until_ready(layer_norm(x_bf16, scale, shift, eps=1e-5))
    ref_bf16 = _reference(x_bf16, scale, shift)
    assert out_bf16.dtype == jnp.bfloat16
    assert jnp.allclose(out_bf16.astype(jnp.float32),
                        ref_bf16.astype(jnp.float32), atol=3e-2, rtol=3e-2)

    print("KERNEL_OK")
</pallas_src>

<mosaic_0001>
module attributes {stable_mosaic.version = 11 : i64} {
  func.func @layernorm_kernel(%arg0: i32, %arg1: memref<16x32xf32, #tpu.memory_space<vmem>>, %arg2: memref<2x32xf32, #tpu.memory_space<vmem>>, %arg3: memref<16x32xf32, #tpu.memory_space<vmem>>) attributes {dimension_semantics = [#tpu.dimension_semantics<parallel>], iteration_bounds = array<i64: 1>, scalar_prefetch = 0 : i64, scratch_operands = 0 : i64, tpu.core_type = #tpu.core_type<tc>, window_params = [{transform_indices = @transform_0, window_bounds = array<i64: 16, 32>}, {pipeline_mode = #tpu.pipeline_mode<synchronous>, transform_indices = @transform_1, window_bounds = array<i64: 2, 32>}, {transform_indices = @transform_2, window_bounds = array<i64: 16, 32>}]} {
    %c0 = arith.constant 0 : index
    %c0_0 = arith.constant 0 : index
    %0 = vector.load %arg1[%c0, %c0_0] : memref<16x32xf32, #tpu.memory_space<vmem>>, vector<16x32xf32>
    %cst = arith.constant dense<0.000000e+00> : vector<16xf32>
    %1 = vector.multi_reduction <add>, %0, %cst [1] : vector<16x32xf32> to vector<16xf32>
    %2 = vector.shape_cast %1 : vector<16xf32> to vector<16x1xf32>
    %cst_1 = arith.constant 3.200000e+01 : f32
    %3 = vector.broadcast %cst_1 : f32 to vector<16x1xf32>
    %4 = arith.divf %2, %3 : vector<16x1xf32>
    %5 = vector.broadcast %4 : vector<16x1xf32> to vector<16x32xf32>
    %6 = arith.subf %0, %5 : vector<16x32xf32>
    %7 = arith.mulf %6, %6 : vector<16x32xf32>
    %cst_2 = arith.constant dense<0.000000e+00> : vector<16xf32>
    %8 = vector.multi_reduction <add>, %7, %cst_2 [1] : vector<16x32xf32> to vector<16xf32>
    %9 = vector.shape_cast %8 : vector<16xf32> to vector<16x1xf32>
    %cst_3 = arith.constant 3.200000e+01 : f32
    %10 = vector.broadcast %cst_3 : f32 to vector<16x1xf32>
    %11 = arith.divf %9, %10 : vector<16x1xf32>
    %cst_4 = arith.constant 9.99999974E-6 : f32
    %12 = vector.broadcast %cst_4 : f32 to vector<16x1xf32>
    %13 = arith.addf %11, %12 : vector<16x1xf32>
    %14 = math.rsqrt %13 : vector<16x1xf32>
    %15 = vector.broadcast %14 : vector<16x1xf32> to vector<16x32xf32>
    %16 = arith.mulf %6, %15 : vector<16x32xf32>
    %c0_5 = arith.constant 0 : index
    %c0_6 = arith.constant 0 : index
    %17 = vector.load %arg2[%c0_5, %c0_6] : memref<2x32xf32, #tpu.memory_space<vmem>>, vector<1x32xf32>
    %c1 = arith.constant 1 : index
    %c0_7 = arith.constant 0 : index
    %18 = vector.load %arg2[%c1, %c0_7] : memref<2x32xf32, #tpu.memory_space<vmem>>, vector<1x32xf32>
    %19 = vector.broadcast %17 : vector<1x32xf32> to vector<16x32xf32>
    %20 = arith.mulf %19, %16 : vector<16x32xf32>
    %21 = vector.broadcast %18 : vector<1x32xf32> to vector<16x32xf32>
    %22 = arith.addf %20, %21 : vector<16x32xf32>
    %c0_8 = arith.constant 0 : index
    %c0_9 = arith.constant 0 : index
    %23 = vector.load %arg3[%c0_8, %c0_9] : memref<16x32xf32, #tpu.memory_space<vmem>>, vector<16x32xf32>
    tpu.vector_store %arg3[%c0_8, %c0_9], %22 {strides = array<i32>} : memref<16x32xf32, #tpu.memory_space<vmem>>, vector<16x32xf32>,
    return
  }
  func.func @transform_0(%arg0: i32) -> (i32, i32) {
    %c0_i32 = arith.constant 0 : i32
    %c0_i32_0 = arith.constant 0 : i32
    return %arg0, %c0_i32 : i32, i32
  }
  func.func @transform_1(%arg0: i32) -> (i32, i32) {
    %c0_i32 = arith.constant 0 : i32
    %c0_i32_0 = arith.constant 0 : i32
    %c0_i32_1 = arith.constant 0 : i32
    return %c0_i32, %c0_i32_0 : i32, i32
  }
  func.func @transform_2(%arg0: i32) -> (i32, i32) {
    %c0_i32 = arith.constant 0 : i32
    %c0_i32_0 = arith.constant 0 : i32
    return %arg0, %c0_i32 : i32, i32
  }
}

</mosaic_0001>

<llo_original>
// kernel: tpu_custom_call.1
$region0: #{tpu_custom_call.1}
  #allocation0 [shape = 'u32[]', space=smem, size = 0x4, offset = 0x4, fixed_abs, tag = 'smem constant byte address 0x4 - core index']
  #allocation1 [shape = 'u32[144,128]{1,0:T(1,128)}', space=vmem, size = 0x12000, scoped, tag = 'internal scratch']
  %s0 = inlined_call_operand.hbm [shape: f32[16,32], index: 0, kind: input, shape index: {}]
  %s1 = inlined_call_operand.hbm [shape: f32[2,32], index: 1, kind: input, shape index: {}]
  %s2 = inlined_call_operand.hbm [shape: f32[16,32], index: 2, kind: output, shape index: {}]
  %s3 = sld [smem:[#allocation0]]
  $region26: #{tpu_custom_call.1} parent=0
    _
  %s5 = ssub.s32 1, %s3
  %s6 = scalar_select 0, %s5, %s3
  $region1: #{tpu_custom_call.1} parent=0
    #allocation2 [shape = 'u8[8192]{0}', space=vmem, size = 0x2000, scoped, tag = 'input window, operand 0, single buffered']
    #allocation3 [shape = 's32[1]{0}', space=sflag, size = 0x4, scoped, tag = 'scoped memory for tpu_custom_call.1']
    #allocation4 [shape = 's32[1]{0}', space=sflag, size = 0x4, scoped, tag = 'scoped memory for tpu_custom_call.1']
    #allocation5 [shape = 'u8[1024]{0}', space=vmem, size = 0x400, scoped, tag = 'input window, operand 1, single buffered']
    #allocation6 [shape = 's32[1]{0}', space=sflag, size = 0x4, scoped, tag = 'scoped memory for tpu_custom_call.1']
    #allocation7 [shape = 'u8[8192]{0}', space=vmem, size = 0x2000, scoped, tag = 'output window, operand 0, single buffered']
    %7 = vsyncpa [#allocation3], 0
    %8 = vsyncpa [#allocation6], 0
    %9 = vsyncpa [#allocation4], 0
    // Predicated region
    $region2: #{tpu_custom_call.1} parent=1 // pred_check
      _
    $region3: #{tpu_custom_call.1} parent=1 // pred_check_branch
      %11 = sbr.rel (0) target = $region5
    $region4: #{tpu_custom_call.1} parent=1 // pred_region
      %s13 = ssub.s32 256, 256
      %14 = vsyncadd [#allocation3], %s13
      %s15 = sshll.u32 [#allocation2], 4
      %s16 = int_to_ptr.vmem [resolvable:$true] %s15
      %21 = dma.hbm_to_vmem [thread:$0]  %s0, 256, %s16, [#allocation3], 128, 128, 8
    $region5: #{tpu_custom_call.1} parent=1 // pred_fallthru
      _
    // Predicated region
    $region6: #{tpu_custom_call.1} parent=1 // pred_check
      _
    $region7: #{tpu_custom_call.1} parent=1 // pred_check_branch
      %23 = sbr.rel (0) target = $region9
    $region8: #{tpu_custom_call.1} parent=1 // pred_region
      %s25 = ssub.s32 32, 32
      %26 = vsyncadd [#allocation6], %s25
      %s28 = sshll.u32 [#allocation5], 4
      %s29 = int_to_ptr.vmem [resolvable:$true] %s28
      %31 = dma.hbm_to_vmem [thread:$0]  %s1, 32, %s29, [#allocation6]
    $region9: #{tpu_custom_call.1} parent=1 // pred_fallthru
      _
    // Predicated region
    $region10: #{tpu_custom_call.1} parent=1 // pred_check
      _
    $region11: #{tpu_custom_call.1} parent=1 // pred_check_branch
      %33 = sbr.rel (0) target = $region13
    $region12: #{tpu_custom_call.1} parent=1 // pred_region
      %34 = dma.done [#allocation3], 256
    $region13: #{tpu_custom_call.1} parent=1 // pred_fallthru
      _
    // Predicated region
    $region14: #{tpu_custom_call.1} parent=1 // pred_check
      _
    $region15: #{tpu_custom_call.1} parent=1 // pred_check_branch
      %36 = sbr.rel (0) target = $region17
    $region16: #{tpu_custom_call.1} parent=1 // pred_region
      %37 = dma.done [#allocation6], 32
    $region17: #{tpu_custom_call.1} parent=1 // pred_fallthru
      _
    %v38 = vld [vmem:[#allocation2] sm:$0xff]
    %v39 = vld [vmem:[#allocation2 + $0x8] sm:$0xff]
    %vm40 = vcmask 261120
    %v41 = vsel %vm40, %v38, 0.0
    %42 = vadd.xlane.f32.xlu0 %v41
    %v43 = vpop.xlane.xlu0 %42
    %v44 = vsel %vm40, %v39, 0.0
    %45 = vadd.xlane.f32.xlu0 %v44
    %v46 = vpop.xlane.xlu0 %45
    %v47 = vrcp.pop 32.0
    %v48 = vmul.f32 %v43, %v47
    %v49 = vmul.f32 %v46, %v47
    %v50 = vsub.f32 %v38, %v48
    %v51 = vsub.f32 %v39, %v49
    %v52 = vmul.f32 %v50, %v50
    %v53 = vmul.f32 %v51, %v51
    %v54 = vsel %vm40, %v52, 0.0
    %55 = vadd.xlane.f32.xlu0 %v54
    %v56 = vpop.xlane.xlu0 %55
    %v57 = vsel %vm40, %v53, 0.0
    %58 = vadd.xlane.f32.xlu0 %v57
    %v59 = vpop.xlane.xlu0 %58
    %v60 = vmul.f32 %v56, %v47
    %v61 = vmul.f32 %v59, %v47
    %v62 = vadd.f32 %v60, 1e-05
    %v63 = vadd.f32 %v61, 1e-05
    %v64 = vrsqrt.pop %v62
    %v65 = vrsqrt.pop %v63
    %v66 = vmul.f32 %v50, %v64
    %v67 = vmul.f32 %v51, %v65
    %v68 = vld [vmem:[#allocation5] sm:$0x1]
    %v69 = vld [vmem:[#allocation5 + $0x1] sm:$0x1]
    %v70 = vlaneseq
    %v71 = vshrl.u32 %v70, 7
    %v72 = vsub.s32 0, %v71
    %v73 = vrot.slane %v68, %v72
    %v74 = vmul.f32 %v73, %v66
    %v75 = vmul.f32 %v73, %v67
    %v76 = vlaneseq
    %v77 = vshrl.u32 %v76, 7
    %v78 = vsub.s32 0, %v77
    %v79 = vrot.slane %v69, %v78
    %v80 = vadd.f32 %v74, %v79
    %v81 = vadd.f32 %v75, %v79
    %82 = vst.msk [vmem:[#allocation7] sm:$0xff] %vm40, %v80
    %83 = vst.msk [vmem:[#allocation7 + $0x8] sm:$0xff] %vm40, %v81
    // Predicated region
    $region18: #{tpu_custom_call.1} parent=1 // pred_check
      _
    $region19: #{tpu_custom_call.1} parent=1 // pred_check_branch
      %85 = sbr.rel (0) target = $region21
    $region20: #{tpu_custom_call.1} parent=1 // pred_region
      %s87 = ssub.s32 256, 256
      %88 = vsyncadd [#allocation4], %s87
      %s89 = sshll.u32 [#allocation7], 4
      %s90 = int_to_ptr.vmem [resolvable:$true] %s89
      %95 = dma.vmem_to_hbm [thread:$0]  %s90, 256, %s2, [#allocation4], 128, 128, 8
    $region21: #{tpu_custom_call.1} parent=1 // pred_fallthru
      _
    // Predicated region
    $region22: #{tpu_custom_call.1} parent=1 // pred_check
      _
    $region23: #{tpu_custom_call.1} parent=1 // pred_check_branch
      %97 = sbr.rel (0) target = $region25
    $region24: #{tpu_custom_call.1} parent=1 // pred_region
      %98 = dma.done [#allocation4], 256
    $region25: #{tpu_custom_call.1} parent=1 // pred_fallthru
      _
    %99 = vsyncpa [#allocation3], 1
    %100 = vsyncpa [#allocation6], 1
    %101 = vsyncpa [#allocation4], 1

</llo_original>
